<compile_context>
chip_gen: v6e
topology: v6e:2x2x1
jax: 0.10.0
libtpu: 0.0.40
codegen_flags: <defaults>
</compile_context>

<pallas_src>
from functools import partial

import jax
import jax.numpy as jnp
from jax.experimental import pallas as pl
from jax.experimental.pallas import tpu as pltpu


def _round_up(x, m):
    return (x + m - 1) // m * m


def _vmem_capacity_bytes():
    """Per-TensorCore VMEM capacity (v5e/v6e: 128 MiB, v7x: 64 MiB)."""
    try:
        cap = getattr(pltpu.get_tpu_info(), "vmem_capacity_bytes", None)
        if cap:
            return int(cap)
    except Exception:
        pass
    return 64 * 1024 * 1024  # conservative (v7x per-core) fallback


def _patch_embed_kernel(x_ref, w_ref, b_ref, o_ref):
    # x_ref: (tm, K)  bf16 patch vectors   (streamed, double-buffered)
    # w_ref: (K, tn)  bf16 projection tile
    # b_ref: (1, tn)  f32  bias tile
    # o_ref: (tm, tn) output tile (Pallas masks any ragged tail rows / lanes)
    acc = jnp.dot(x_ref[...], w_ref[...], preferred_element_type=jnp.float32)
    o_ref[...] = (acc + b_ref[...]).astype(o_ref.dtype)


@partial(jax.jit, static_argnames=("patch_size", "tm", "out_dtype"))
def patch_embed_3d(x, weight, bias, patch_size, *, tm=1024, out_dtype=None):
    """x: (B, C, T, H, W); weight: (E, C, pt, ph, pw); bias: (E,) -> (B, N, E)."""
    B, C, T, H, W = x.shape
    pt, ph, pw = patch_size
    E = weight.shape[0]
    assert T % pt == 0 and H % ph == 0 and W % pw == 0
    Tb, Hb, Wb = T // pt, H // ph, W // pw
    N = Tb * Hb * Wb
    M = B * N
    K = C * pt * ph * pw
    Ep = _round_up(E, 128)                      # lane-padded GEMM width
    out_dtype = jnp.dtype(out_dtype) if out_dtype is not None else x.dtype
    out_bytes = out_dtype.itemsize

    # --- wrapper glue: bf16 cast + space-to-depth (one fused XLA pass, see header) ---
    xp = x.astype(jnp.bfloat16)
    xp = xp.reshape(B, C, Tb, pt, Hb, ph, Wb, pw)
    xp = xp.transpose(0, 2, 4, 6, 1, 3, 5, 7)   # (B, Tb, Hb, Wb, C, pt, ph, pw)
    xp = xp.reshape(M, K)

    w2d = weight.reshape(E, K).T.astype(jnp.bfloat16)   # (K, E), rows C-major
    b2d = bias.astype(jnp.float32).reshape(1, E)
    if Ep != E:                                 # zero-pad GEMM width to 128 lanes
        w2d = jnp.pad(w2d, ((0, 0), (0, Ep - E)))
        b2d = jnp.pad(b2d, ((0, 0), (0, Ep - E)))

    # --- tile selection / VMEM budgeting (generation-aware) ---
    cap = _vmem_capacity_bytes()
    budget = (cap * 3) // 4

    # Embed tile: keep the whole (padded) width in one block when the weight is
    # small; otherwise tile it so the resident weight block stays bounded and the
    # grid gains a second parallel axis.
    if K * Ep * 2 <= (4 << 20) and 2 * K * Ep * 2 <= budget // 2:
        tn = Ep
    else:
        tn = 128
        for cand in (512, 256):
            if Ep % cand == 0 and 2 * K * cand * 2 <= budget // 2:
                tn = cand
                break
    nN = Ep // tn

    def vmem_est(t):
        return (2 * t * K * 2               # double-buffered bf16 x tiles
                + 2 * K * tn * 2            # double-buffered bf16 weight tiles
                + 2 * tn * 4                # double-buffered f32 bias tiles
                + 2 * t * tn * out_bytes)   # double-buffered output tiles

    if vmem_est(16) > budget:
        raise ValueError(
            f"PatchEmbed3D tiles do not fit VMEM: K={K}, tn={tn}, "
            f"min est {vmem_est(16)} B > budget {budget} B")

    tm = min(tm, _round_up(M, 16))
    while tm > 16 and vmem_est(tm) > budget:
        tm //= 2
    tm = max(16, _round_up(tm, 16))

    # Enough grid steps for v7x megacore (2 TCs) + pipeline steady state.
    min_steps = 8
    if pl.cdiv(M, tm) * nN < min_steps:
        want_nM = pl.cdiv(min_steps, nN)
        tm = max(16, min(tm, _round_up(pl.cdiv(M, want_nM), 16)))
    nM = pl.cdiv(M, tm)

    vmem_limit = int(min(max(vmem_est(tm) + (2 << 20), 8 << 20), (cap * 9) // 10))

    out = pl.pallas_call(
        _patch_embed_kernel,
        out_shape=jax.ShapeDtypeStruct((M, E), out_dtype),
        grid_spec=pltpu.PrefetchScalarGridSpec(
            num_scalar_prefetch=0,
            grid=(nM, nN),
            in_specs=[
                pl.BlockSpec((tm, K), lambda i, j: (i, 0)),   # patch rows (streamed)
                pl.BlockSpec((K, tn), lambda i, j: (0, j)),   # weight tile
                pl.BlockSpec((1, tn), lambda i, j: (0, j)),   # bias tile
            ],
            out_specs=pl.BlockSpec((tm, tn), lambda i, j: (i, j)),
        ),
        compiler_params=pltpu.CompilerParams(
            dimension_semantics=("parallel", "parallel"),
            vmem_limit_bytes=vmem_limit,
        ),
        cost_estimate=pl.CostEstimate(
            flops=2 * M * K * Ep,
            transcendentals=0,
            bytes_accessed=M * K * 2 + K * Ep * 2 + Ep * 4 + M * E * out_bytes,
        ),
    )(xp, w2d, b2d)

    return out.reshape(B, N, E)                 # == proj(x).flatten(2).transpose(1, 2)


if __name__ == "__main__":
    # Small shapes consistent with the module (M = 512 patch rows).
    B, C = 2, 4
    T, H, W = 8, 32, 32
    patch_size = (2, 4, 4)
    embed_dim = 32

    key = jax.random.PRNGKey(0)
    kx, kw, kb = jax.random.split(key, 3)

    x = jax.random.normal(kx, (B, C, T, H, W), dtype=jnp.float32)
    # Deterministic synthetic Conv3d parameters (shapes from nn.Conv3d __init__).
    weight = jax.random.normal(kw, (embed_dim, C, *patch_size), dtype=jnp.float32) * 0.02
    bias = jax.random.normal(kb, (embed_dim,), dtype=jnp.float32) * 0.02

    out = patch_embed_3d(x, weight, bias, patch_size=patch_size)
    jax.block_until_ready(out)

    # Sanity: compare against a plain-JAX f32 conv reference (kernel uses bf16
    # operands with an f32 accumulator, so tolerance is loosened accordingly).
    ref = jax.lax.conv_general_dilated(
        x, weight,
        window_strides=patch_size, padding="VALID",
        dimension_numbers=("NCDHW", "OIDHW", "NCDHW"),
        precision=jax.lax.Precision.HIGHEST,
    ) + bias.reshape(1, embed_dim, 1, 1, 1)
    ref = ref.reshape(B, embed_dim, -1).transpose(0, 2, 1)

    N = (T // patch_size[0]) * (H // patch_size[1]) * (W // patch_size[2])
    assert out.shape == (B, N, embed_dim)
    err = float(jnp.max(jnp.abs(out - ref)))
    assert jnp.allclose(out, ref, atol=2e-2, rtol=2e-2), err

    print("KERNEL_OK")
</pallas_src>

<mosaic_0001>
module attributes {stable_mosaic.version = 11 : i64} {
  func.func @_patch_embed_kernel(%arg0: i32, %arg1: i32, %arg2: memref<64x128xbf16, #tpu.memory_space<vmem>>, %arg3: memref<128x128xbf16, #tpu.memory_space<vmem>>, %arg4: memref<1x128xf32, #tpu.memory_space<vmem>>, %arg5: memref<64x128xf32, #tpu.memory_space<vmem>>) attributes {dimension_semantics = [#tpu.dimension_semantics<parallel>, #tpu.dimension_semantics<parallel>], iteration_bounds = array<i64: 8, 1>, scalar_prefetch = 0 : i64, scratch_operands = 0 : i64, tpu.core_type = #tpu.core_type<tc>, window_params = [{transform_indices = @transform_0, window_bounds = array<i64: 64, 128>}, {transform_indices = @transform_1, window_bounds = array<i64: 128, 128>}, {transform_indices = @transform_2, window_bounds = array<i64: 1, 128>}, {transform_indices = @transform_3, window_bounds = array<i64: 64, 128>}]} {
    %c0 = arith.constant 0 : index
    %c0_0 = arith.constant 0 : index
    %0 = vector.load %arg2[%c0, %c0_0] : memref<64x128xbf16, #tpu.memory_space<vmem>>, vector<64x128xbf16>
    %c0_1 = arith.constant 0 : index
    %c0_2 = arith.constant 0 : index
    %1 = vector.load %arg3[%c0_1, %c0_2] : memref<128x128xbf16, #tpu.memory_space<vmem>>, vector<128x128xbf16>
    %cst = arith.constant dense<0.000000e+00> : vector<64x128xf32>
    %2 = tpu.matmul %0, %1, %cst {dimension_numbers = #tpu.dot_dimension_numbers<[1], [0], [0], [1], [0, 0, 1, 1], [], []>} : vector<64x128xbf16>, vector<128x128xbf16>, vector<64x128xf32> -> vector<64x128xf32>
    %c0_3 = arith.constant 0 : index
    %c0_4 = arith.constant 0 : index
    %3 = vector.load %arg4[%c0_3, %c0_4] : memref<1x128xf32, #tpu.memory_space<vmem>>, vector<1x128xf32>
    %4 = vector.broadcast %3 : vector<1x128xf32> to vector<64x128xf32>
    %5 = arith.addf %2, %4 : vector<64x128xf32>
    %c0_5 = arith.constant 0 : index
    %c0_6 = arith.constant 0 : index
    %6 = vector.load %arg5[%c0_5, %c0_6] : memref<64x128xf32, #tpu.memory_space<vmem>>, vector<64x128xf32>
    tpu.vector_store %arg5[%c0_5, %c0_6], %5 {strides = array<i32>} : memref<64x128xf32, #tpu.memory_space<vmem>>, vector<64x128xf32>,
    return
  }
  func.func @transform_0(%arg0: i32, %arg1: i32) -> (i32, i32) {
    %c0_i32 = arith.constant 0 : i32
    %c0_i32_0 = arith.constant 0 : i32
    return %arg0, %c0_i32 : i32, i32
  }
  func.func @transform_1(%arg0: i32, %arg1: i32) -> (i32, i32) {
    %c0_i32 = arith.constant 0 : i32
    %c0_i32_0 = arith.constant 0 : i32
    return %c0_i32, %arg1 : i32, i32
  }
  func.func @transform_2(%arg0: i32, %arg1: i32) -> (i32, i32) {
    %c0_i32 = arith.constant 0 : i32
    %c0_i32_0 = arith.constant 0 : i32
    return %c0_i32, %arg1 : i32, i32
  }
  func.func @transform_3(%arg0: i32, %arg1: i32) -> (i32, i32) {
    %c0_i32 = arith.constant 0 : i32
    return %arg0, %arg1 : i32, i32
  }
}

</mosaic_0001>

<llo_original>
// kernel: patch_embed_3d.1
$region0: #{patch_embed_3d.1}
  #allocation0 [shape = 'u32[]', space=smem, size = 0x4, offset = 0x4, fixed_abs, tag = 'smem constant byte address 0x4 - core index']
  #allocation1 [shape = 'u32[144,128]{1,0:T(1,128)}', space=vmem, size = 0x12000, scoped, tag = 'internal scratch']
  %s0 = inlined_call_operand.vmem [shape: bf16[512,128], index: 0, kind: input, shape index: {}]
  %s1 = inlined_call_operand.vmem [shape: bf16[128,128], index: 1, kind: input, shape index: {}]
  %s2 = inlined_call_operand.vmem [shape: f32[1,128], index: 2, kind: input, shape index: {}]
  %s3 = inlined_call_operand.vmem [shape: f32[512,32], index: 3, kind: output, shape index: {}]
  %s4 = sld [smem:[#allocation0]]
  $region45: #{patch_embed_3d.1} parent=0
    _
  %s6 = ssub.s32 1, %s4
  %s7 = scalar_select 0, %s6, %s4
  loop: start=0, step=1, limit=10
  $region2: #{patch_embed_3d.1} parent=0 // loop_pre_header
    _
  $region3: #{patch_embed_3d.1} parent=0 // loop_header
    %s9 = sphi 0, %s13
    %p10 = scmp.ge.s32.totalorder %s9, 10
    %s16 = sphi 0, %s28
    %s17 = sphi 0, %s24
    %s18 = sphi 0, %s16
    %s19 = sphi 0, %s17
    %s20 = sphi 0, %s18
    %s21 = sphi 0, %s19
    %s31 = sphi 0, %s33
    %s34 = sphi 0, %s31
    %s35 = sphi 0, %s34
    %s51 = sphi 0, %s35
    %s57 = sphi 0, %s59
    %s60 = sphi 0, %s57
    %s61 = sphi 0, %s60
    %s77 = sphi 0, %s61
    %s83 = sphi 0, %s85
    %s86 = sphi 0, %s83
    %s87 = sphi 0, %s86
    %s103 = sphi 0, %s87
    %s111 = sphi 0, %s113
    %s114 = sphi 0, %s111
    %s115 = sphi 0, %s114
    %s131 = sphi 0, %s115
  $region4: #{patch_embed_3d.1} parent=0 // loop_header_branch
    %12 = sbr.rel (%p10) target = $region8
  $region5: #{patch_embed_3d.1} parent=0 // loop_body
    %s14 = ssub.s32 %s9, 1
    %s15 = ssub.s32 %s9, 2
    %s22 = sadd.s32 1, %s17
    %p23 = scmp.ge.s32.totalorder %s22, 1
    %s24 = scalar_select %p23, 0, %s22
    %s25 = sadd.s32 1, %s16
    %s26 = scalar_select %p23, %s25, %s16
    %p27 = scmp.ge.s32.totalorder %s26, 8
    %s28 = scalar_select %p27, 0, %s26
    %s29 = ssub.s32 %s16, %s28
    %p30 = scmp.eq.s32.totalorder %s29, 0
    %s32 = sadd.s32 %s31, 1
    %s33 = scalar_select %p30, %s31, %s32
    %p36 = pneg %p30
    %p37 = scmp.eq.s32.totalorder %s9, 7
    %p38 = por %p36, %p37
    %p39 = scmp.ne.s32.totalorder %s31, %s34
    %p40 = scmp.eq.s32.totalorder %s9, 0
    %p41 = por %p39, %p40
    %p42 = scmp.ne.s32.totalorder %s31, %s34
    %p43 = scmp.eq.s32.totalorder %s14, 7
    %p44 = por %p42, %p43
    %p45 = scmp.ne.s32.totalorder %s34, %s35
    %p46 = scmp.eq.s32.totalorder %s14, 0
    %p47 = por %p45, %p46
    %p48 = scmp.ne.s32.totalorder %s34, %s35
    %p49 = scmp.eq.s32.totalorder %s15, 7
    %p50 = por %p48, %p49
    %p52 = scmp.ne.s32.totalorder %s35, %s51
    %p53 = scmp.eq.s32.totalorder %s15, 0
    %p54 = por %p52, %p53
    %s55 = ssub.s32 %s17, %s24
    %p56 = scmp.eq.s32.totalorder %s55, 0
    %s58 = sadd.s32 %s57, 1
    %s59 = scalar_select %p56, %s57, %s58
    %p62 = pneg %p56
    %p63 = scmp.eq.s32.totalorder %s9, 7
    %p64 = por %p62, %p63
    %p65 = scmp.ne.s32.totalorder %s57, %s60
    %p66 = scmp.eq.s32.totalorder %s9, 0
    %p67 = por %p65, %p66
    %p68 = scmp.ne.s32.totalorder %s57, %s60
    %p69 = scmp.eq.s32.totalorder %s14, 7
    %p70 = por %p68, %p69
    %p71 = scmp.ne.s32.totalorder %s60, %s61
    %p72 = scmp.eq.s32.totalorder %s14, 0
    %p73 = por %p71, %p72
    %p74 = scmp.ne.s32.totalorder %s60, %s61
    %p75 = scmp.eq.s32.totalorder %s15, 7
    %p76 = por %p74, %p75
    %p78 = scmp.ne.s32.totalorder %s61, %s77
    %p79 = scmp.eq.s32.totalorder %s15, 0
    %p80 = por %p78, %p79
    %s81 = ssub.s32 %s17, %s24
    %p82 = scmp.eq.s32.totalorder %s81, 0
    %s84 = sadd.s32 %s83, 1
    %s85 = scalar_select %p82, %s83, %s84
    %p88 = pneg %p82
    %p89 = scmp.eq.s32.totalorder %s9, 7
    %p90 = por %p88, %p89
    %p91 = scmp.ne.s32.totalorder %s83, %s86
    %p92 = scmp.eq.s32.totalorder %s9, 0
    %p93 = por %p91, %p92
    %p94 = scmp.ne.s32.totalorder %s83, %s86
    %p95 = scmp.eq.s32.totalorder %s14, 7
    %p96 = por %p94, %p95
    %p97 = scmp.ne.s32.totalorder %s86, %s87
    %p98 = scmp.eq.s32.totalorder %s14, 0
    %p99 = por %p97, %p98
    %p100 = scmp.ne.s32.totalorder %s86, %s87
    %p101 = scmp.eq.s32.totalorder %s15, 7
    %p102 = por %p100, %p101
    %p104 = scmp.ne.s32.totalorder %s87, %s103
    %p105 = scmp.eq.s32.totalorder %s15, 0
    %p106 = por %p104, %p105
    %s107 = ssub.s32 %s16, %s28
    %s108 = ssub.s32 %s17, %s24
    %s109 = sor.u32 %s107, %s108
    %p110 = scmp.eq.s32.totalorder %s109, 0
    %s112 = sadd.s32 %s111, 1
    %s113 = scalar_select %p110, %s111, %s112
    %p116 = pneg %p110
    %p117 = scmp.eq.s32.totalorder %s9, 7
    %p118 = por %p116, %p117
    %p119 = scmp.ne.s32.totalorder %s111, %s114
    %p120 = scmp.eq.s32.totalorder %s9, 0
    %p121 = por %p119, %p120
    %p122 = scmp.ne.s32.totalorder %s111, %s114
    %p123 = scmp.eq.s32.totalorder %s14, 7
    %p124 = por %p122, %p123
    %p125 = scmp.ne.s32.totalorder %s114, %s115
    %p126 = scmp.eq.s32.totalorder %s14, 0
    %p127 = por %p125, %p126
    %p128 = scmp.ne.s32.totalorder %s114, %s115
    %p129 = scmp.eq.s32.totalorder %s15, 7
    %p130 = por %p128, %p129
    %p132 = scmp.ne.s32.totalorder %s115, %s131
    %p133 = scmp.eq.s32.totalorder %s15, 0
    %p134 = por %p132, %p133
    %p135 = scmp.le.s32.totalorder 1, %s9
    %p136 = scmp.lt.s32.totalorder %s9, 9
    %p137 = pnand %p135, %p136
    %p138 = pneg %p137
    // Predicated region
    $region9: #{patch_embed_3d.1} parent=5 // pred_check
      _
    $region10: #{patch_embed_3d.1} parent=5 // pred_check_branch
      %140 = sbr.rel (%p137) target = $region12
    $region11: #{patch_embed_3d.1} parent=5 // pred_region
      %s141 = ssub.s32 %s9, 1
      // Predicated region
      $region13: #{patch_embed_3d.1} parent=11 // pred_check
        %p142 = pneg %p73
      $region14: #{patch_embed_3d.1} parent=11 // pred_check_branch
        %144 = sbr.rel (%p142) target = $region16
      $region15: #{patch_embed_3d.1} parent=11 // pred_region
        %p145 = scmp.lt.s32.totalorder %s19, 0
        %s146 = scalar_select %p145, %s19, 0
        %s147 = smul.addr %s146, 4
        %s148 = scalar_lea.vmem %s1, %s147
      $region16: #{patch_embed_3d.1} parent=11 // pred_fallthru
        _
      // Predicated region
      $region17: #{patch_embed_3d.1} parent=11 // pred_check
        %p149 = pneg %p99
      $region18: #{patch_embed_3d.1} parent=11 // pred_check_branch
        %151 = sbr.rel (%p149) target = $region20
      $region19: #{patch_embed_3d.1} parent=11 // pred_region
        %p152 = scmp.lt.s32.totalorder %s19, 0
        %s153 = scalar_select %p152, %s19, 0
        %s154 = scalar_lea.vmem %s2, %s153
      $region20: #{patch_embed_3d.1} parent=11 // pred_fallthru
        _
    $region12: #{patch_embed_3d.1} parent=5 // pred_fallthru
      _
    %p155 = scmp.lt.s32.totalorder %s9, 8
    // Predicated region
    $region21: #{patch_embed_3d.1} parent=5 // pred_check
      %p156 = pneg %p155
    $region22: #{patch_embed_3d.1} parent=5 // pred_check_branch
      %158 = sbr.rel (%p156) target = $region24
    $region23: #{patch_embed_3d.1} parent=5 // pred_region
      // Predicated region
      $region25: #{patch_embed_3d.1} parent=23 // pred_check
        %p159 = pneg %p41
      $region26: #{patch_embed_3d.1} parent=23 // pred_check_branch
        %161 = sbr.rel (%p159) target = $region28
      $region27: #{patch_embed_3d.1} parent=23 // pred_region
        %s162 = smul.u32 8, %s16
        %p163 = scmp.lt.s32.totalorder %s162, 63
        %s164 = scalar_select %p163, %s162, 63
        %s165 = smul.addr %s164, 4
        %s166 = scalar_lea.vmem %s0, %s165
        %s167 = smul.u32 8, %s16
      $region28: #{patch_embed_3d.1} parent=23 // pred_fallthru
        _
    $region24: #{patch_embed_3d.1} parent=5 // pred_fallthru
      _
    %p168 = scmp.le.s32.totalorder 1, %s9
    %p169 = scmp.lt.s32.totalorder %s9, 9
    %p170 = pnand %p168, %p169
    %p171 = pneg %p170
    // Predicated region
    $region29: #{patch_embed_3d.1} parent=5 // pred_check
      _
    $region30: #{patch_embed_3d.1} parent=5 // pred_check_branch
      %173 = sbr.rel (%p170) target = $region32
    $region31: #{patch_embed_3d.1} parent=5 // pred_region
      %s174 = ssub.s32 %s9, 1
      %s175 = smul.u32 8, %s18
      %p176 = scmp.lt.s32.totalorder %s175, 63
      %s177 = scalar_select %p176, %s175, 63
      %s178 = smul.addr %s177, 4
      %s179 = scalar_lea.vmem %s0, %s178
      %p180 = pneg %p47
      %p181 = pneg %p44
      %p182 = scmp.lt.s32.totalorder %s19, 0
      %s183 = scalar_select %p182, %s19, 0
      %s184 = smul.addr %s183, 4
      %s185 = scalar_lea.vmem %s1, %s184
      %p186 = pneg %p73
      %p187 = pneg %p70
      %p188 = scmp.lt.s32.totalorder %s19, 0
      %s189 = scalar_select %p188, %s19, 0
      %s190 = scalar_lea.vmem %s2, %s189
      %p191 = pneg %p99
      %p192 = pneg %p96
      %p193 = pneg %p127
      %p194 = pneg %p124
      %s195 = smul.u32 8, %s18
      %p196 = scmp.lt.s32.totalorder %s195, 63
      %s197 = scalar_select %p196, %s195, 63
      %p198 = scmp.lt.s32.totalorder %s19, 0
      %s199 = scalar_select %p198, %s19, 0
      %s200 = sadd.s32 %s199, %s197
      %s201 = smul.addr %s200, 8
      %s202 = scalar_lea.vmem %s3, %s201
      %s203 = smul.u32 8, %s18
      %p204 = scmp.lt.s32.totalorder %s203, 63
      %s205 = scalar_select %p204, %s203, 63
      %s206 = smul.addr %s205, 4
      %s207 = scalar_lea.vmem %s0, %s206
      %s208 = smul.u32 8, %s18
      %p209 = scmp.lt.s32.totalorder %s19, 0
      %s210 = scalar_select %p209, %s19, 0
      %s211 = smul.addr %s210, 4
      %s212 = scalar_lea.vmem %s1, %s211
      %p213 = scmp.lt.s32.totalorder %s19, 0
      %s214 = scalar_select %p213, %s19, 0
      %s215 = scalar_lea.vmem %s2, %s214
      %s216 = smul.u32 8, %s18
      %p217 = scmp.lt.s32.totalorder %s216, 63
      %s218 = scalar_select %p217, %s216, 63
      %p219 = scmp.lt.s32.totalorder %s19, 0
      %s220 = scalar_select %p219, %s19, 0
      %s221 = sadd.s32 %s220, %s218
      %s222 = smul.addr %s221, 8
      %s223 = scalar_lea.vmem %s3, %s222
      %s224 = smul.u32 8, %s18
      %v226 = vld [vmem:[%s207] sm:$0xf]
      %v227 = vld [vmem:[%s207 + $0x4] sm:$0xf]
      %v228 = vld [vmem:[%s207 + $0x8] sm:$0xf]
      %v229 = vld [vmem:[%s207 + $0xc] sm:$0xf]
      %v230 = vld [vmem:[%s207 + $0x10] sm:$0xf]
      %v231 = vld [vmem:[%s207 + $0x14] sm:$0xf]
      %v232 = vld [vmem:[%s207 + $0x18] sm:$0xf]
      %v233 = vld [vmem:[%s207 + $0x1c] sm:$0xf]
      %v234 = vld [vmem:[%s212] sm:$0xf]
      %v235 = vld [vmem:[%s212 + $0x4] sm:$0xf]
      %v236 = vld [vmem:[%s212 + $0x8] sm:$0xf]
      %v237 = vld [vmem:[%s212 + $0xc] sm:$0xf]
      %v238 = vld [vmem:[%s212 + $0x10] sm:$0xf]
      %v239 = vld [vmem:[%s212 + $0x14] sm:$0xf]
      %v240 = vld [vmem:[%s212 + $0x18] sm:$0xf]
      %v241 = vld [vmem:[%s212 + $0x1c] sm:$0xf]
      %v242 = vld [vmem:[%s212 + $0x20] sm:$0xf]
      %v243 = vld [vmem:[%s212 + $0x24] sm:$0xf]
      %v244 = vld [vmem:[%s212 + $0x28] sm:$0xf]
      %v245 = vld [vmem:[%s212 + $0x2c] sm:$0xf]
      %v246 = vld [vmem:[%s212 + $0x30] sm:$0xf]
      %v247 = vld [vmem:[%s212 + $0x34] sm:$0xf]
      %v248 = vld [vmem:[%s212 + $0x38] sm:$0xf]
      %v249 = vld [vmem:[%s212 + $0x3c] sm:$0xf]
      %v250 = vld [vmem:[%s215] sm:$0x1]
      %v252 = vlaneseq
      %v253 = vshrl.u32 %v252, 7
      %v254 = vsub.s32 0, %v253
      %v255 = vrot.slane %v250, %v254
      %v265 = vunpack.c.l.b16 %v226
      %v266 = vunpack.c.l.b16 %v227
      %v267 = vunpack.c.l.b16 %v228
      %v268 = vunpack.c.l.b16 %v229
      %v269 = vunpack.c.l.b16 %v230
      %v270 = vunpack.c.l.b16 %v231
      %v271 = vunpack.c.l.b16 %v232
      %v272 = vunpack.c.l.b16 %v233
      %v273 = vpack.c.b16 %v266, %v265
      %v274 = vpack.c.b16 %v268, %v267
      %v275 = vpack.c.b16 %v270, %v269
      %v276 = vpack.c.b16 %v272, %v271
      %v297 = vunpack.c.l.b16 %v234
      %v298 = vunpack.c.l.b16 %v235
      %v299 = vunpack.c.l.b16 %v236
      %v300 = vunpack.c.l.b16 %v237
      %v301 = vunpack.c.l.b16 %v238
      %v302 = vunpack.c.l.b16 %v239
      %v303 = vunpack.c.l.b16 %v240
      %v304 = vunpack.c.l.b16 %v241
      %v305 = vunpack.c.l.b16 %v242
      %v306 = vunpack.c.l.b16 %v243
      %v307 = vunpack.c.l.b16 %v244
      %v308 = vunpack.c.l.b16 %v245
      %v309 = vunpack.c.l.b16 %v246
      %v310 = vunpack.c.l.b16 %v247
      %v311 = vunpack.c.l.b16 %v248
      %v312 = vunpack.c.l.b16 %v249
      %v313 = vpack.c.b16 %v298, %v297
      %v314 = vpack.c.b16 %v300, %v299
      %v315 = vpack.c.b16 %v302, %v301
      %v316 = vpack.c.b16 %v304, %v303
      %v317 = vpack.c.b16 %v306, %v305
      %v318 = vpack.c.b16 %v308, %v307
      %v319 = vpack.c.b16 %v310, %v309
      %v320 = vpack.c.b16 %v312, %v311
      %329 = vmatprep.subr.bf16.mxu0 0
      %330 = vmatpush1.bf16.msra.mxu0 %v320
      %331 = vmatprep.subr.bf16.mxu0 0
      %332 = vmatpush1.bf16.msra.mxu0 %v319
      %333 = vmatprep.subr.bf16.mxu0 0
      %334 = vmatpush1.bf16.msra.mxu0 %v318
      %335 = vmatprep.subr.bf16.mxu0 0
      %336 = vmatpush1.bf16.msra.mxu0 %v317
      %337 = vmatprep.subr.bf16.mxu0 0
      %338 = vmatpush1.bf16.msra.mxu0 %v316
      %339 = vmatprep.subr.bf16.mxu0 0
      %340 = vmatpush1.bf16.msra.mxu0 %v315
      %341 = vmatprep.subr.bf16.mxu0 0
      %342 = vmatpush1.bf16.msra.mxu0 %v314
      %343 = vmatprep.subr.bf16.mxu0 0
      %344 = vmatpush1.bf16.msra.mxu0 %v313
      %345 = vmatprep.subr.bf16.mxu0 0
      %346 = vmatpush2.bf16.msra.mxu0 0
      %347 = vmatprep.subr.bf16.mxu0 0
      %348 = vmatpush2.bf16.msra.mxu0 0
      %349 = vmatprep.subr.bf16.mxu0 0
      %350 = vmatpush2.bf16.msra.mxu0 0
      %351 = vmatprep.subr.bf16.mxu0 0
      %352 = vmatpush2.bf16.msra.mxu0 0
      %353 = vmatprep.subr.bf16.mxu0 0
      %354 = vmatpush2.bf16.msra.mxu0 0
      %355 = vmatprep.subr.bf16.mxu0 0
      %356 = vmatpush2.bf16.msra.mxu0 0
      %357 = vmatprep.subr.bf16.mxu0 0
      %358 = vmatpush2.bf16.msra.mxu0 0
      %359 = vmatprep.subr.bf16.mxu0 0
      %360 = vmatpush2.bf16.msra.mxu0 0
      %361 = vmatprep.mubr.bf16.mxu0 0
      %362 = vmatmul.mubr.bf16.gmra.mxu0 %v273
      %v363 = vpop.f32.mrf.mxu0
      %v364 = vadd.f32 %v255, %v363
      %v365 = vpop.f32.mrf.mxu0
      %v366 = vpop.f32.mrf.mxu0
      %v367 = vadd.f32 %v255, %v366
      %v368 = vpop.f32.mrf.mxu0
      %369 = vmatprep.mubr.bf16.mxu0 0
      %370 = vmatmul.mubr.bf16.gmra.mxu0 %v274
      %v371 = vpop.f32.mrf.mxu0
      %v372 = vadd.f32 %v255, %v371
      %v373 = vpop.f32.mrf.mxu0
      %v374 = vpop.f32.mrf.mxu0
      %v375 = vadd.f32 %v255, %v374
      %v376 = vpop.f32.mrf.mxu0
      %377 = vmatprep.mubr.bf16.mxu0 0
      %378 = vmatmul.mubr.bf16.gmra.mxu0 %v275
      %v379 = vpop.f32.mrf.mxu0
      %v380 = vadd.f32 %v255, %v379
      %v381 = vpop.f32.mrf.mxu0
      %v382 = vpop.f32.mrf.mxu0
      %v383 = vadd.f32 %v255, %v382
      %v384 = vpop.f32.mrf.mxu0
      %385 = vmatprep.mubr.bf16.mxu0 0
      %386 = vmatmul.mubr.bf16.gmra.mxu0 %v276
      %v387 = vpop.f32.mrf.mxu0
      %v388 = vadd.f32 %v255, %v387
      %v389 = vpop.f32.mrf.mxu0
      %v390 = vpop.f32.mrf.mxu0
      %v391 = vadd.f32 %v255, %v390
      %v392 = vpop.f32.mrf.mxu0
      %393 = vdwg.mxu0
      %394 = vst [vmem:[%s223] sm:$0xff] %v364
      %395 = vst [vmem:[%s223 + $0x8] sm:$0xff] %v367
      %396 = vst [vmem:[%s223 + $0x10] sm:$0xff] %v372
      %397 = vst [vmem:[%s223 + $0x18] sm:$0xff] %v375
      %398 = vst [vmem:[%s223 + $0x20] sm:$0xff] %v380
      %399 = vst [vmem:[%s223 + $0x28] sm:$0xff] %v383
      %400 = vst [vmem:[%s223 + $0x30] sm:$0xff] %v388
      %401 = vst [vmem:[%s223 + $0x38] sm:$0xff] %v391
      %s402 = smul.u32 8, %s18
      %p403 = scmp.lt.s32.totalorder %s402, 63
      %s404 = scalar_select %p403, %s402, 63
      %p405 = scmp.lt.s32.totalorder %s19, 0
      %s406 = scalar_select %p405, %s19, 0
      %s407 = sadd.s32 %s406, %s404
      %s408 = smul.addr %s407, 8
      %s409 = scalar_lea.vmem %s3, %s408
      // Predicated region
      $region33: #{patch_embed_3d.1} parent=31 // pred_check
        %p410 = pneg %p124
      $region34: #{patch_embed_3d.1} parent=31 // pred_check_branch
        %412 = sbr.rel (%p410) target = $region36
      $region35: #{patch_embed_3d.1} parent=31 // pred_region
        %s413 = smul.u32 8, %s18
      $region36: #{patch_embed_3d.1} parent=31 // pred_fallthru
        _
    $region32: #{patch_embed_3d.1} parent=5 // pred_fallthru
      _
    %p414 = scmp.le.s32.totalorder 2, %s9
    // Predicated region
    $region37: #{patch_embed_3d.1} parent=5 // pred_check
      %p415 = pneg %p414
    $region38: #{patch_embed_3d.1} parent=5 // pred_check_branch
      %417 = sbr.rel (%p415) target = $region40
    $region39: #{patch_embed_3d.1} parent=5 // pred_region
      %s418 = ssub.s32 %s9, 2
      // Predicated region
      $region41: #{patch_embed_3d.1} parent=39 // pred_check
        %p419 = pneg %p130
      $region42: #{patch_embed_3d.1} parent=39 // pred_check_branch
        %421 = sbr.rel (%p419) target = $region44
      $region43: #{patch_embed_3d.1} parent=39 // pred_region
        %s422 = smul.u32 8, %s20
        %p423 = scmp.lt.s32.totalorder %s422, 63
        %s424 = scalar_select %p423, %s422, 63
        %p425 = scmp.lt.s32.totalorder %s21, 0
        %s426 = scalar_select %p425, %s21, 0
        %s427 = sadd.s32 %s426, %s424
        %s428 = smul.addr %s427, 8
        %s429 = scalar_lea.vmem %s3, %s428
      $region44: #{patch_embed_3d.1} parent=39 // pred_fallthru
        _
    $region40: #{patch_embed_3d.1} parent=5 // pred_fallthru
      _
  $region6: #{patch_embed_3d.1} parent=0 // loop_footer
    %s13 = sadd.s32 1, %s9
  $region7: #{patch_embed_3d.1} parent=0 // loop_footer_branch
    %8 = sbr.rel target = $region3
  $region8: #{patch_embed_3d.1} parent=0 // loop_exit
    _

</llo_original>
